<compile_context>
chip_gen: v7x
topology: tpu7x:2x2x1
jax: 0.10.0
libtpu: 0.0.40
codegen_flags: <defaults>
</compile_context>

<pallas_src>
import functools

import numpy as np
import jax
import jax.numpy as jnp
from jax import lax
from jax.experimental import pallas as pl
from jax.experimental.pallas import tpu as pltpu


def _round_up(v, m):
    return ((v + m - 1) // m) * m


# ----------------------------------------------------------------------------
# Pallas conv2d kernel: in-kernel im2col + one MXU matmul per image.
# ----------------------------------------------------------------------------
def _conv_kernel(*args, n_in, c_ins, c_in_ps, H, W, KH, KW, dil, pad, relu,
                 mxu_dtype):
    x_refs = args[:n_in]
    w_ref, m_ref, b_ref, o_ref, col_ref = args[n_in:]
    HW = H * W

    # im2col stacking.  For destination flat position j, tap (kh, kw) reads
    # flat source j + off, off = (kh*dil - pad)*W + (kw*dil - pad):
    #   * j + off outside [0, HW)  -> top/bottom zero padding  (zero-filled)
    #   * column wrap-around       -> left/right zero padding  (0/1 mask,
    #     applied once here during stacking, never on the matmul path)
    seg = 0
    for idx in range(n_in):
        ci = c_ins[idx]
        cip = c_in_ps[idx]
        x_val = x_refs[idx][0]                          # (ci, HW) lane-dense
        for kh in range(KH):
            for kw in range(KW):
                off = (kh * dil - pad) * W + (kw * dil - pad)
                r0 = seg + (kh * KW + kw) * cip
                dst_lo = min(max(0, -off), HW)
                dst_hi = max(dst_lo, HW - max(0, off))
                if dst_hi > dst_lo:
                    v = x_val[:, dst_lo + off:dst_hi + off]
                    if kw * dil != pad:                 # border columns only
                        v = v * m_ref[kw:kw + 1, dst_lo:dst_hi]
                    col_ref[r0:r0 + ci, dst_lo:dst_hi] = v
                if dst_lo > 0:                          # rows above the image
                    col_ref[r0:r0 + ci, 0:dst_lo] = jnp.zeros(
                        (ci, dst_lo), x_val.dtype)
                if dst_hi < HW:                         # rows below the image
                    col_ref[r0:r0 + ci, dst_hi:HW] = jnp.zeros(
                        (ci, HW - dst_hi), x_val.dtype)
                if cip > ci:                            # sublane-align filler
                    col_ref[r0 + ci:r0 + cip, :] = jnp.zeros(
                        (cip - ci, HW), x_val.dtype)
        seg += KH * KW * cip

    # Single MXU matmul, bf16 operands, f32 accumulation; bias + ReLU fused.
    acc = jnp.dot(w_ref[...], col_ref[...].astype(mxu_dtype),
                  preferred_element_type=jnp.float32)
    acc = acc + b_ref[...]
    if relu:
        acc = jnp.maximum(acc, 0.0)
    o_ref[0] = acc.astype(o_ref.dtype)


def conv2d_pallas(xs, weight, bias=None, *, padding=0, stride=1, dilation=1,
                  relu=False, compute_dtype=jnp.bfloat16):
    """nn.Conv2d(..., bias) [+ ReLU] on NCHW input(s) via the Pallas kernel.

    `xs` may be a single (N, C, H, W) array or a tuple of arrays that the
    PyTorch module would have concatenated along the channel axis (the kernel
    consumes them separately -> no cat([...]) HBM round-trip).
    """
    if not isinstance(xs, (tuple, list)):
        xs = (xs,)
    N, _, H, W = xs[0].shape
    c_splits = tuple(int(xi.shape[1]) for xi in xs)
    c_in_total = sum(c_splits)
    C_out, c_in_w, KH, KW = weight.shape
    assert c_in_w == c_in_total

    # Tiny convs (2->1 spatial gates, 3-channel 1x1s): pallas_call + MXU
    # overhead exceeds the math -> leave them to XLA fusion (perf review).
    if C_out * c_in_total * KH * KW <= 32:
        return conv2d_ref(xs, weight, bias, padding=padding, stride=stride,
                          dilation=dilation, relu=relu,
                          compute_dtype=compute_dtype)

    x_dtype = xs[0].dtype
    mxu_dtype = compute_dtype if compute_dtype is not None else x_dtype

    # Stride-1 valid output extent under this padding/dilation; the strided
    # output is a free slice of the flat result (holds for every conv here).
    H1 = H + 2 * padding - dilation * (KH - 1)
    W1 = W + 2 * padding - dilation * (KW - 1)
    assert 0 < H1 <= H and 0 < W1 <= W
    HW = H * W

    C_out_p = _round_up(C_out, 8)
    c_in_ps = tuple(_round_up(c, 8) for c in c_splits)
    K_total = KH * KW * sum(c_in_ps)

    # Weight as one (C_out_p, K_total) slab (bf16) whose column order matches
    # the im2col row order: [input segment][tap][channel (padded to 8)].
    parts, c0 = [], 0
    for ci, cip in zip(c_splits, c_in_ps):
        wi = jnp.transpose(weight[:, c0:c0 + ci], (0, 2, 3, 1))  # (O,KH,KW,ci)
        wi = jnp.pad(wi, ((0, 0), (0, 0), (0, 0), (0, cip - ci)))
        parts.append(wi.reshape(C_out, KH * KW * cip))
        c0 += ci
    w2 = parts[0] if len(parts) == 1 else jnp.concatenate(parts, axis=1)
    w2 = jnp.pad(w2, ((0, C_out_p - C_out), (0, 0))).astype(mxu_dtype)

    if bias is None:
        b2 = jnp.zeros((C_out_p, 1), jnp.float32)
    else:
        b2 = jnp.pad(bias.astype(jnp.float32).reshape(C_out, 1),
                     ((0, C_out_p - C_out), (0, 0)))

    # Static 0/1 column masks over flattened spatial positions (left/right
    # zero padding); row padding is handled by the zero-filled scratch lanes.
    col = np.arange(W)
    mask_np = np.zeros((KW, HW), np.float32)
    for kw in range(KW):
        ow = kw * dilation - padding
        mask_np[kw] = np.tile(((col + ow >= 0) & (col + ow < W))
                              .astype(np.float32), H)
    masks = jnp.asarray(mask_np, dtype=x_dtype)

    x_flats = [xi.reshape(N, ci, HW) for xi, ci in zip(xs, c_splits)]

    kernel = functools.partial(
        _conv_kernel, n_in=len(xs), c_ins=c_splits, c_in_ps=c_in_ps,
        H=H, W=W, KH=KH, KW=KW, dil=dilation, pad=padding, relu=relu,
        mxu_dtype=mxu_dtype)

    in_specs = (
        [pl.BlockSpec((1, ci, HW), lambda n: (n, 0, 0)) for ci in c_splits]
        + [pl.BlockSpec((C_out_p, K_total), lambda n: (0, 0)),
           pl.BlockSpec((KW, HW), lambda n: (0, 0)),
           pl.BlockSpec((C_out_p, 1), lambda n: (0, 0))])

    out_flat = pl.pallas_call(
        kernel,
        out_shape=jax.ShapeDtypeStruct((N, C_out_p, HW), x_dtype),
        grid_spec=pltpu.PrefetchScalarGridSpec(
            num_scalar_prefetch=0,
            grid=(N,),
            in_specs=in_specs,
            out_specs=pl.BlockSpec((1, C_out_p, HW), lambda n: (n, 0, 0)),
            scratch_shapes=[pltpu.VMEM((K_total, HW), x_dtype)],
        ),
        compiler_params=pltpu.CompilerParams(
            dimension_semantics=("parallel",),
            vmem_limit_bytes=48 * 1024 * 1024),
    )(*x_flats, w2, masks, b2)

    out = out_flat.reshape(N, C_out_p, H, W)        # free: lane-dense NCHW-flat
    # TODO(synk): move the stride-2 subsample into the kernel epilogue (even
    # output rows via a strip index_map + column subsample before the store)
    # so the HBM write is H1/2 x W1/2 instead of H x W.
    return out[:, :C_out, :H1:stride, :W1:stride]


# ----------------------------------------------------------------------------
# XLA reference conv with the same calling convention (tuple inputs OK).
# Also used as the dispatch target for the tiny gate / 1x1 convs.
# ----------------------------------------------------------------------------
def conv2d_ref(xs, weight, bias=None, *, padding=0, stride=1, dilation=1,
               relu=False, compute_dtype=None):
    x = jnp.concatenate(xs, axis=1) if isinstance(xs, (tuple, list)) else xs
    lhs, rhs = x, weight
    if compute_dtype is not None:
        lhs = lhs.astype(compute_dtype)
        rhs = rhs.astype(compute_dtype)
    out = lax.conv_general_dilated(
        lhs, rhs, window_strides=(stride, stride),
        padding=((padding, padding), (padding, padding)),
        rhs_dilation=(dilation, dilation),
        dimension_numbers=("NCHW", "OIHW", "NCHW"),
        preferred_element_type=jnp.float32)
    if bias is not None:
        out = out + bias.astype(jnp.float32)[None, :, None, None]
    if relu:
        out = jnp.maximum(out, 0.0)
    return out.astype(x.dtype)


# ----------------------------------------------------------------------------
# sub_encoder_level composition (conv_fn = Pallas kernel or XLA reference).
# ----------------------------------------------------------------------------
def _resize(x, h, w):
    # TODO(synk): PyTorch F.interpolate(bilinear) kept as an XLA bilinear
    # resize (no clean Pallas win; identical op in both compared paths).
    n, c = x.shape[:2]
    return jax.image.resize(x, (n, c, h, w), method="bilinear", antialias=False)


def re_block(conv_fn, x, p):
    # Concat elimination: layer2/layer3 consume the would-be cat([...]) pieces
    # as separate inputs (K-split weight slab) -> no HBM concat round-trips.
    t1 = conv_fn(x, p["l1_w"], p["l1_b"], padding=1, dilation=1, relu=True)
    t2 = conv_fn((t1, x), p["l2_w"], p["l2_b"], padding=2, dilation=2,
                 relu=True)
    return conv_fn((t2, t1, x), p["l3_w"], p["l3_b"], padding=1, dilation=1,
                   relu=False)


def spa_fusion(conv_fn, x0, x2, x4, p):
    # TODO(synk): fuse the 1x1 compress/excite chain + sigmoid + weighted sum
    # into one Pallas epilogue kernel; today the tiny (<=3 channel) convs are
    # routed to XLA so the whole tail stays a fused XLA region.
    def gate(x, w):
        avg = jnp.mean(x, axis=1, keepdims=True)
        mx = jnp.max(x, axis=1, keepdims=True)
        return conv_fn(jnp.concatenate([avg, mx], axis=1), w, None,
                       padding=1, dilation=1, relu=False)

    out = jnp.concatenate(
        [gate(x0, p["c1_w"]), gate(x2, p["c2_w"]), gate(x4, p["c3_w"])], axis=1)
    out = conv_fn(out, p["comp1_w"], p["comp1_b"], padding=0, relu=True)
    out = conv_fn(out, p["comp2_w"], p["comp2_b"], padding=0, relu=True)
    out = conv_fn(out, p["exc_w"], p["exc_b"], padding=0, relu=False)
    out = jax.nn.sigmoid(out)
    w0, w2, w4 = jnp.split(out, 3, axis=1)
    return x0 * w0 + x2 * w2 + x4 * w4


def spa_layer(conv_fn, x, p):
    _, _, H, W = x.shape
    x2 = _resize(x, H // 2, W // 2)
    x4 = _resize(x, H // 4, W // 4)
    y0 = re_block(conv_fn, x, p["rb0"])
    y2 = re_block(conv_fn, x2, p["rb2"])
    y4 = re_block(conv_fn, x4, p["rb4"])
    y2 = _resize(y2, H, W)
    y4 = _resize(y4, H, W)
    y = spa_fusion(conv_fn, y0, y2, y4, p["fusion"])
    return x + y


def sub_encoder_level(conv_fn, x, p):
    t1 = conv_fn(x, p["l1_w"], p["l1_b"], padding=1, dilation=1, relu=True)
    t2 = conv_fn((t1, x), p["l2_w"], p["l2_b"], padding=2, dilation=2,
                 relu=True)
    t = conv_fn((t2, t1, x), p["l3_w"], p["l3_b"], padding=1, dilation=1,
                relu=False)
    t = conv_fn(t, p["down1_w"], p["down1_b"], padding=1, stride=2, relu=False)
    for blk in p["spa"]:
        t = spa_layer(conv_fn, t, blk)
    return t


# ----------------------------------------------------------------------------
# Parameter construction (matches the PyTorch module's layer shapes).
# ----------------------------------------------------------------------------
def _conv_init(key, cin, cout, k, *, bias=True, scale=0.1):
    kw_, kb_ = jax.random.split(key)
    w = scale * jax.random.normal(kw_, (cout, cin, k, k), jnp.float32)
    b = scale * jax.random.normal(kb_, (cout,), jnp.float32) if bias else None
    return w, b


def init_params(key, cin, cout, spa_num):
    keys = iter(jax.random.split(key, 64))
    p = {}
    p["l1_w"], p["l1_b"] = _conv_init(next(keys), cin, cout, 3)
    p["l2_w"], p["l2_b"] = _conv_init(next(keys), cin + cout, cout, 3)
    p["l3_w"], p["l3_b"] = _conv_init(next(keys), cin + 2 * cout, cout, 3)
    p["down1_w"], p["down1_b"] = _conv_init(next(keys), cout, cout, 3)

    def re_block_params(c):
        q = {}
        q["l1_w"], q["l1_b"] = _conv_init(next(keys), c, c, 3)
        q["l2_w"], q["l2_b"] = _conv_init(next(keys), 2 * c, c, 3)
        q["l3_w"], q["l3_b"] = _conv_init(next(keys), 3 * c, c, 3)
        return q

    def fusion_params():
        q = {}
        q["c1_w"], _ = _conv_init(next(keys), 2, 1, 3, bias=False)
        q["c2_w"], _ = _conv_init(next(keys), 2, 1, 3, bias=False)
        q["c3_w"], _ = _conv_init(next(keys), 2, 1, 3, bias=False)
        q["comp1_w"], q["comp1_b"] = _conv_init(next(keys), 3, 3, 1)
        q["comp2_w"], q["comp2_b"] = _conv_init(next(keys), 3, 3, 1)
        q["exc_w"], q["exc_b"] = _conv_init(next(keys), 3, 3, 1)
        return q

    p["spa"] = [{"rb0": re_block_params(cout), "rb2": re_block_params(cout),
                 "rb4": re_block_params(cout), "fusion": fusion_params()}
                for _ in range(spa_num)]
    return p


if __name__ == "__main__":
    key = jax.random.PRNGKey(0)
    kx, kp, ka, kb = jax.random.split(key, 4)

    N, C_in, C_out, H, W, spa_num = 2, 4, 8, 16, 16, 1
    x = jax.random.normal(kx, (N, C_in, H, W), jnp.float32)
    params = init_params(kp, C_in, C_out, spa_num)

    # --- exact-math (f32 operand) validation of the Pallas conv kernel ------
    # stride-2 conv (down1 config)
    xa = jax.random.normal(ka, (N, C_out, H, W), jnp.float32)
    got = conv2d_pallas(xa, params["down1_w"], params["down1_b"],
                        padding=1, stride=2, compute_dtype=jnp.float32)
    want = conv2d_ref(xa, params["down1_w"], params["down1_b"],
                      padding=1, stride=2)
    assert got.shape == want.shape
    assert jnp.allclose(got, want, atol=1e-4, rtol=1e-4), \
        float(jnp.max(jnp.abs(got - want)))

    # two-input (concat-free) dilated conv (layer2 config)
    xb = jax.random.normal(kb, (N, C_out, H, W), jnp.float32)
    got = conv2d_pallas((xb, x), params["l2_w"], params["l2_b"],
                        padding=2, dilation=2, relu=True,
                        compute_dtype=jnp.float32)
    want = conv2d_ref((xb, x), params["l2_w"], params["l2_b"],
                      padding=2, dilation=2, relu=True)
    assert jnp.allclose(got, want, atol=1e-4, rtol=1e-4), \
        float(jnp.max(jnp.abs(got - want)))

    # --- full sub_encoder_level forward: Pallas convs (bf16 MXU operands) ---
    # --- vs XLA reference convs with the same bf16 operands / f32 accum.  ---
    pallas_conv = functools.partial(conv2d_pallas, compute_dtype=jnp.bfloat16)
    ref_conv = functools.partial(conv2d_ref, compute_dtype=jnp.bfloat16)
    fwd_pallas = jax.jit(functools.partial(sub_encoder_level, pallas_conv))
    fwd_ref = jax.jit(functools.partial(sub_encoder_level, ref_conv))

    out = jax.block_until_ready(fwd_pallas(x, params))
    ref = jax.block_until_ready(fwd_ref(x, params))

    assert out.shape == (N, C_out, H // 2, W // 2), out.shape
    assert bool(jnp.all(jnp.isfinite(out)))
    assert jnp.allclose(out, ref, atol=2e-3, rtol=2e-3), \
        float(jnp.max(jnp.abs(out - ref)))
    print("KERNEL_OK")
</pallas_src>

<mosaic_0001>
module attributes {stable_mosaic.version = 11 : i64} {
  func.func @_conv_kernel(%arg0: i32, %arg1: memref<1x8x256xf32, #tpu.memory_space<vmem>>, %arg2: memref<8x72xf32, #tpu.memory_space<vmem>>, %arg3: memref<3x256xf32, #tpu.memory_space<vmem>>, %arg4: memref<8x1xf32, #tpu.memory_space<vmem>>, %arg5: memref<1x8x256xf32, #tpu.memory_space<vmem>>, %arg6: memref<72x256xf32, #tpu.memory_space<vmem>>) attributes {dimension_semantics = [#tpu.dimension_semantics<parallel>], iteration_bounds = array<i64: 2>, scalar_prefetch = 0 : i64, scratch_operands = 1 : i64, tpu.core_type = #tpu.core_type<tc>, window_params = [{transform_indices = @transform_0, window_bounds = array<i64: 1, 8, 256>}, {pipeline_mode = #tpu.pipeline_mode<synchronous>, transform_indices = @transform_1, window_bounds = array<i64: 8, 72>}, {pipeline_mode = #tpu.pipeline_mode<synchronous>, transform_indices = @transform_2, window_bounds = array<i64: 3, 256>}, {pipeline_mode = #tpu.pipeline_mode<synchronous>, transform_indices = @transform_3, window_bounds = array<i64: 8, 1>}, {transform_indices = @transform_4, window_bounds = array<i64: 1, 8, 256>}]} {
    %c0 = arith.constant 0 : index
    %c0_0 = arith.constant 0 : index
    %c0_1 = arith.constant 0 : index
    %0 = vector.load %arg1[%c0, %c0_0, %c0_1] : memref<1x8x256xf32, #tpu.memory_space<vmem>>, vector<1x8x256xf32>
    %1 = vector.shape_cast %0 : vector<1x8x256xf32> to vector<8x256xf32>
    %2 = vector.extract_strided_slice %1 {offsets = [0, 0], sizes = [8, 239], strides = [1, 1]} : vector<8x256xf32> to vector<8x239xf32>
    %c0_2 = arith.constant 0 : index
    %c17 = arith.constant 17 : index
    %3 = vector.load %arg3[%c0_2, %c17] : memref<3x256xf32, #tpu.memory_space<vmem>>, vector<1x239xf32>
    %4 = vector.broadcast %3 : vector<1x239xf32> to vector<8x239xf32>
    %5 = arith.mulf %2, %4 : vector<8x239xf32>
    %c0_3 = arith.constant 0 : index
    %c17_4 = arith.constant 17 : index
    %6 = vector.load %arg6[%c0_3, %c17_4] : memref<72x256xf32, #tpu.memory_space<vmem>>, vector<8x239xf32>
    tpu.vector_store %arg6[%c0_3, %c17_4], %5 {strides = array<i32>} : memref<72x256xf32, #tpu.memory_space<vmem>>, vector<8x239xf32>,
    %cst = arith.constant 0.000000e+00 : f32
    %7 = vector.broadcast %cst : f32 to vector<8x17xf32>
    %c0_5 = arith.constant 0 : index
    %c0_6 = arith.constant 0 : index
    %8 = vector.load %arg6[%c0_5, %c0_6] : memref<72x256xf32, #tpu.memory_space<vmem>>, vector<8x17xf32>
    tpu.vector_store %arg6[%c0_5, %c0_6], %7 {strides = array<i32>} : memref<72x256xf32, #tpu.memory_space<vmem>>, vector<8x17xf32>,
    %9 = vector.extract_strided_slice %1 {offsets = [0, 0], sizes = [8, 240], strides = [1, 1]} : vector<8x256xf32> to vector<8x240xf32>
    %c8 = arith.constant 8 : index
    %c16 = arith.constant 16 : index
    %10 = vector.load %arg6[%c8, %c16] : memref<72x256xf32, #tpu.memory_space<vmem>>, vector<8x240xf32>
    tpu.vector_store %arg6[%c8, %c16], %9 {strides = array<i32>} : memref<72x256xf32, #tpu.memory_space<vmem>>, vector<8x240xf32>,
    %cst_7 = arith.constant 0.000000e+00 : f32
    %11 = vector.broadcast %cst_7 : f32 to vector<8x16xf32>
    %c8_8 = arith.constant 8 : index
    %c0_9 = arith.constant 0 : index
    %12 = vector.load %arg6[%c8_8, %c0_9] : memref<72x256xf32, #tpu.memory_space<vmem>>, vector<8x16xf32>
    tpu.vector_store %arg6[%c8_8, %c0_9], %11 {strides = array<i32>} : memref<72x256xf32, #tpu.memory_space<vmem>>, vector<8x16xf32>,
    %13 = vector.extract_strided_slice %1 {offsets = [0, 0], sizes = [8, 241], strides = [1, 1]} : vector<8x256xf32> to vector<8x241xf32>
    %c2 = arith.constant 2 : index
    %c15 = arith.constant 15 : index
    %14 = vector.load %arg3[%c2, %c15] : memref<3x256xf32, #tpu.memory_space<vmem>>, vector<1x241xf32>
    %15 = vector.broadcast %14 : vector<1x241xf32> to vector<8x241xf32>
    %16 = arith.mulf %13, %15 : vector<8x241xf32>
    %c16_10 = arith.constant 16 : index
    %c15_11 = arith.constant 15 : index
    %17 = vector.load %arg6[%c16_10, %c15_11] : memref<72x256xf32, #tpu.memory_space<vmem>>, vector<8x241xf32>
    tpu.vector_store %arg6[%c16_10, %c15_11], %16 {strides = array<i32>} : memref<72x256xf32, #tpu.memory_space<vmem>>, vector<8x241xf32>,
    %cst_12 = arith.constant 0.000000e+00 : f32
    %18 = vector.broadcast %cst_12 : f32 to vector<8x15xf32>
    %c16_13 = arith.constant 16 : index
    %c0_14 = arith.constant 0 : index
    %19 = vector.load %arg6[%c16_13, %c0_14] : memref<72x256xf32, #tpu.memory_space<vmem>>, vector<8x15xf32>
    tpu.vector_store %arg6[%c16_13, %c0_14], %18 {strides = array<i32>} : memref<72x256xf32, #tpu.memory_space<vmem>>, vector<8x15xf32>,
    %20 = vector.extract_strided_slice %1 {offsets = [0, 0], sizes = [8, 255], strides = [1, 1]} : vector<8x256xf32> to vector<8x255xf32>
    %c0_15 = arith.constant 0 : index
    %c1 = arith.constant 1 : index
    %21 = vector.load %arg3[%c0_15, %c1] : memref<3x256xf32, #tpu.memory_space<vmem>>, vector<1x255xf32>
    %22 = vector.broadcast %21 : vector<1x255xf32> to vector<8x255xf32>
    %23 = arith.mulf %20, %22 : vector<8x255xf32>
    %c24 = arith.constant 24 : index
    %c1_16 = arith.constant 1 : index
    %24 = vector.load %arg6[%c24, %c1_16] : memref<72x256xf32, #tpu.memory_space<vmem>>, vector<8x255xf32>
    tpu.vector_store %arg6[%c24, %c1_16], %23 {strides = array<i32>} : memref<72x256xf32, #tpu.memory_space<vmem>>, vector<8x255xf32>,
    %cst_17 = arith.constant 0.000000e+00 : f32
    %25 = vector.broadcast %cst_17 : f32 to vector<8x1xf32>
    %c24_18 = arith.constant 24 : index
    %c0_19 = arith.constant 0 : index
    %26 = vector.load %arg6[%c24_18, %c0_19] : memref<72x256xf32, #tpu.memory_space<vmem>>, vector<8x1xf32>
    tpu.vector_store %arg6[%c24_18, %c0_19], %25 {strides = array<i32>} : memref<72x256xf32, #tpu.memory_space<vmem>>, vector<8x1xf32>,
    %c32 = arith.constant 32 : index
    %c0_20 = arith.constant 0 : index
    %27 = vector.load %arg6[%c32, %c0_20] : memref<72x256xf32, #tpu.memory_space<vmem>>, vector<8x256xf32>
    tpu.vector_store %arg6[%c32, %c0_20], %1 {strides = array<i32>} : memref<72x256xf32, #tpu.memory_space<vmem>>, vector<8x256xf32>,
    %28 = vector.extract_strided_slice %1 {offsets = [0, 1], sizes = [8, 255], strides = [1, 1]} : vector<8x256xf32> to vector<8x255xf32>
    %c2_21 = arith.constant 2 : index
    %c0_22 = arith.constant 0 : index
    %29 = vector.load %arg3[%c2_21, %c0_22] : memref<3x256xf32, #tpu.memory_space<vmem>>, vector<1x255xf32>
    %30 = vector.broadcast %29 : vector<1x255xf32> to vector<8x255xf32>
    %31 = arith.mulf %28, %30 : vector<8x255xf32>
    %c40 = arith.constant 40 : index
    %c0_23 = arith.constant 0 : index
    %32 = vector.load %arg6[%c40, %c0_23] : memref<72x256xf32, #tpu.memory_space<vmem>>, vector<8x255xf32>
    tpu.vector_store %arg6[%c40, %c0_23], %31 {strides = array<i32>} : memref<72x256xf32, #tpu.memory_space<vmem>>, vector<8x255xf32>,
    %cst_24 = arith.constant 0.000000e+00 : f32
    %33 = vector.broadcast %cst_24 : f32 to vector<8x1xf32>
    %c40_25 = arith.constant 40 : index
    %c255 = arith.constant 255 : index
    %34 = vector.load %arg6[%c40_25, %c255] : memref<72x256xf32, #tpu.memory_space<vmem>>, vector<8x1xf32>
    tpu.vector_store %arg6[%c40_25, %c255], %33 {strides = array<i32>} : memref<72x256xf32, #tpu.memory_space<vmem>>, vector<8x1xf32>,
    %35 = vector.extract_strided_slice %1 {offsets = [0, 15], sizes = [8, 241], strides = [1, 1]} : vector<8x256xf32> to vector<8x241xf32>
    %c0_26 = arith.constant 0 : index
    %c0_27 = arith.constant 0 : index
    %36 = vector.load %arg3[%c0_26, %c0_27] : memref<3x256xf32, #tpu.memory_space<vmem>>, vector<1x241xf32>
    %37 = vector.broadcast %36 : vector<1x241xf32> to vector<8x241xf32>
    %38 = arith.mulf %35, %37 : vector<8x241xf32>
    %c48 = arith.constant 48 : index
    %c0_28 = arith.constant 0 : index
    %39 = vector.load %arg6[%c48, %c0_28] : memref<72x256xf32, #tpu.memory_space<vmem>>, vector<8x241xf32>
    tpu.vector_store %arg6[%c48, %c0_28], %38 {strides = array<i32>} : memref<72x256xf32, #tpu.memory_space<vmem>>, vector<8x241xf32>,
    %cst_29 = arith.constant 0.000000e+00 : f32
    %40 = vector.broadcast %cst_29 : f32 to vector<8x15xf32>
    %c48_30 = arith.constant 48 : index
    %c241 = arith.constant 241 : index
    %41 = vector.load %arg6[%c48_30, %c241] : memref<72x256xf32, #tpu.memory_space<vmem>>, vector<8x15xf32>
    tpu.vector_store %arg6[%c48_30, %c241], %40 {strides = array<i32>} : memref<72x256xf32, #tpu.memory_space<vmem>>, vector<8x15xf32>,
    %42 = vector.extract_strided_slice %1 {offsets = [0, 16], sizes = [8, 240], strides = [1, 1]} : vector<8x256xf32> to vector<8x240xf32>
    %c56 = arith.constant 56 : index
    %c0_31 = arith.constant 0 : index
    %43 = vector.load %arg6[%c56, %c0_31] : memref<72x256xf32, #tpu.memory_space<vmem>>, vector<8x240xf32>
    tpu.vector_store %arg6[%c56, %c0_31], %42 {strides = array<i32>} : memref<72x256xf32, #tpu.memory_space<vmem>>, vector<8x240xf32>,
    %cst_32 = arith.constant 0.000000e+00 : f32
    %44 = vector.broadcast %cst_32 : f32 to vector<8x16xf32>
    %c56_33 = arith.constant 56 : index
    %c240 = arith.constant 240 : index
    %45 = vector.load %arg6[%c56_33, %c240] : memref<72x256xf32, #tpu.memory_space<vmem>>, vector<8x16xf32>
    tpu.vector_store %arg6[%c56_33, %c240], %44 {strides = array<i32>} : memref<72x256xf32, #tpu.memory_space<vmem>>, vector<8x16xf32>,
    %46 = vector.extract_strided_slice %1 {offsets = [0, 17], sizes = [8, 239], strides = [1, 1]} : vector<8x256xf32> to vector<8x239xf32>
    %c2_34 = arith.constant 2 : index
    %c0_35 = arith.constant 0 : index
    %47 = vector.load %arg3[%c2_34, %c0_35] : memref<3x256xf32, #tpu.memory_space<vmem>>, vector<1x239xf32>
    %48 = vector.broadcast %47 : vector<1x239xf32> to vector<8x239xf32>
    %49 = arith.mulf %46, %48 : vector<8x239xf32>
    %c64 = arith.constant 64 : index
    %c0_36 = arith.constant 0 : index
    %50 = vector.load %arg6[%c64, %c0_36] : memref<72x256xf32, #tpu.memory_space<vmem>>, vector<8x239xf32>
    tpu.vector_store %arg6[%c64, %c0_36], %49 {strides = array<i32>} : memref<72x256xf32, #tpu.memory_space<vmem>>, vector<8x239xf32>,
    %cst_37 = arith.constant 0.000000e+00 : f32
    %51 = vector.broadcast %cst_37 : f32 to vector<8x17xf32>
    %c64_38 = arith.constant 64 : index
    %c239 = arith.constant 239 : index
    %52 = vector.load %arg6[%c64_38, %c239] : memref<72x256xf32, #tpu.memory_space<vmem>>, vector<8x17xf32>
    tpu.vector_store %arg6[%c64_38, %c239], %51 {strides = array<i32>} : memref<72x256xf32, #tpu.memory_space<vmem>>, vector<8x17xf32>,
    %c0_39 = arith.constant 0 : index
    %c0_40 = arith.constant 0 : index
    %53 = vector.load %arg2[%c0_39, %c0_40] : memref<8x72xf32, #tpu.memory_space<vmem>>, vector<8x72xf32>
    %c0_41 = arith.constant 0 : index
    %c0_42 = arith.constant 0 : index
    %54 = vector.load %arg6[%c0_41, %c0_42] : memref<72x256xf32, #tpu.memory_space<vmem>>, vector<72x256xf32>
    %cst_43 = arith.constant dense<0.000000e+00> : vector<8x256xf32>
    %55 = tpu.matmul %53, %54, %cst_43 {dimension_numbers = #tpu.dot_dimension_numbers<[1], [0], [0], [1], [0, 0, 1, 1], [], []>} : vector<8x72xf32>, vector<72x256xf32>, vector<8x256xf32> -> vector<8x256xf32>
    %c0_44 = arith.constant 0 : index
    %c0_45 = arith.constant 0 : index
    %56 = vector.load %arg4[%c0_44, %c0_45] : memref<8x1xf32, #tpu.memory_space<vmem>>, vector<8x1xf32>
    %57 = vector.broadcast %56 : vector<8x1xf32> to vector<8x256xf32>
    %58 = arith.addf %55, %57 : vector<8x256xf32>
    %c0_46 = arith.constant 0 : index
    %c0_47 = arith.constant 0 : index
    %c0_48 = arith.constant 0 : index
    %59 = vector.load %arg5[%c0_46, %c0_47, %c0_48] : memref<1x8x256xf32, #tpu.memory_space<vmem>>, vector<1x8x256xf32>
    %60 = vector.shape_cast %59 : vector<1x8x256xf32> to vector<8x256xf32>
    %61 = vector.shape_cast %58 : vector<8x256xf32> to vector<1x8x256xf32>
    tpu.vector_store %arg5[%c0_46, %c0_47, %c0_48], %61 {strides = array<i32>} : memref<1x8x256xf32, #tpu.memory_space<vmem>>, vector<1x8x256xf32>,
    return
  }
  func.func @transform_0(%arg0: i32) -> (i32, i32, i32) {
    %c0_i32 = arith.constant 0 : i32
    %c0_i32_0 = arith.constant 0 : i32
    %c0_i32_1 = arith.constant 0 : i32
    return %arg0, %c0_i32, %c0_i32_0 : i32, i32, i32
  }
  func.func @transform_1(%arg0: i32) -> (i32, i32) {
    %c0_i32 = arith.constant 0 : i32
    %c0_i32_0 = arith.constant 0 : i32
    %c0_i32_1 = arith.constant 0 : i32
    return %c0_i32, %c0_i32_0 : i32, i32
  }
  func.func @transform_2(%arg0: i32) -> (i32, i32) {
    %c0_i32 = arith.constant 0 : i32
    %c0_i32_0 = arith.constant 0 : i32
    %c0_i32_1 = arith.constant 0 : i32
    return %c0_i32, %c0_i32_0 : i32, i32
  }
  func.func @transform_3(%arg0: i32) -> (i32, i32) {
    %c0_i32 = arith.constant 0 : i32
    %c0_i32_0 = arith.constant 0 : i32
    %c0_i32_1 = arith.constant 0 : i32
    return %c0_i32, %c0_i32_0 : i32, i32
  }
  func.func @transform_4(%arg0: i32) -> (i32, i32, i32) {
    %c0_i32 = arith.constant 0 : i32
    %c0_i32_0 = arith.constant 0 : i32
    %c0_i32_1 = arith.constant 0 : i32
    return %arg0, %c0_i32, %c0_i32_0 : i32, i32, i32
  }
}

</mosaic_0001>

<llo_original>
// kernel: tpu_custom_call.1
$region0: #{tpu_custom_call.1}
  #allocation0 [shape = 'u32[]', space=smem, size = 0x4, offset = 0x4, fixed_abs, tag = 'smem constant byte address 0x4 - core index']
  #allocation1 [shape = 'u32[144,128]{1,0:T(1,128)}', space=vmem, size = 0x12000, scoped, tag = 'internal scratch']
  #allocation2 [shape = 'f32[72,256]{1,0:T(8,128)}', space=vmem, size = 0x12000, scoped, tag = 'scratch operand']
  %s0 = inlined_call_operand.hbm [shape: f32[2,8,256], index: 0, kind: input, shape index: {}]
  %s1 = inlined_call_operand.vmem [shape: f32[8,72], index: 1, kind: input, shape index: {}]
  %s2 = inlined_call_operand.vmem [shape: f32[3,256], index: 2, kind: input, shape index: {}]
  %s3 = inlined_call_operand.vmem [shape: f32[8,1], index: 3, kind: input, shape index: {}]
  %s4 = inlined_call_operand.hbm [shape: f32[2,8,256], index: 4, kind: output, shape index: {}]
  %s5 = sld [smem:[#allocation0]]
  $region53: #{tpu_custom_call.1} parent=0
    _
  %s7 = ssub.s32 1, %s5
  %s8 = scalar_select 0, %s7, %s5
  $region1: #{tpu_custom_call.1} parent=0
    #allocation3 [shape = 'u8[16384]{0}', space=vmem, size = 0x4000, scoped, tag = 'input window, operand 0']
    #allocation4 [shape = 's32[2]{0}', space=sflag, size = 0x8, scoped, tag = 'scoped memory for tpu_custom_call.1']
    #allocation5 [shape = 's32[2]{0}', space=sflag, size = 0x8, scoped, tag = 'scoped memory for tpu_custom_call.1']
    #allocation6 [shape = 'u8[16384]{0}', space=vmem, size = 0x4000, scoped, tag = 'output window, operand 0']
    %9 = vsyncpa [#allocation4], 0
    %s10 = scalar_lea.sflag [#allocation4], 1
    %11 = vsyncpa %s10, 0
    %12 = vsyncpa [#allocation5], 0
    %s13 = scalar_lea.sflag [#allocation5], 1
    %14 = vsyncpa %s13, 0
    loop: start=0, step=1, limit=4
    $region2: #{tpu_custom_call.1} parent=1 // loop_pre_header
      _
    $region3: #{tpu_custom_call.1} parent=1 // loop_header
      %s16 = sphi 0, %s20
      %p17 = scmp.ge.s32.totalorder %s16, 4
      %s26 = sphi 0, %s28
      %s29 = sphi 0, %s26
      %s30 = sphi 0, %s29
      %s46 = sphi 0, %s30
      %s50 = sphi 0, %s50
      %s52 = sphi 0, %s50
      %s53 = sphi 0, %s52
      %s67 = sphi 0, %s53
      %s71 = sphi 0, %s71
      %s73 = sphi 0, %s71
      %s74 = sphi 0, %s73
      %s88 = sphi 0, %s74
      %s92 = sphi 0, %s92
      %s94 = sphi 0, %s92
      %s95 = sphi 0, %s94
      %s109 = sphi 0, %s95
      %s115 = sphi 0, %s117
      %s118 = sphi 0, %s115
      %s119 = sphi 0, %s118
      %s135 = sphi 0, %s119
    $region4: #{tpu_custom_call.1} parent=1 // loop_header_branch
      %19 = sbr.rel (%p17) target = $region8
    $region5: #{tpu_custom_call.1} parent=1 // loop_body
      %s21 = ssub.s32 %s16, 1
      %s22 = ssub.s32 %s16, 2
      %s23 = sadd.s32 %s16, 1
      %s24 = ssub.s32 %s16, %s23
      %p25 = scmp.eq.s32.totalorder %s24, 0
      %s27 = sadd.s32 %s26, 1
      %s28 = scalar_select %p25, %s26, %s27
      %p31 = pneg %p25
      %p32 = scmp.eq.s32.totalorder %s16, 1
      %p33 = por %p31, %p32
      %p34 = scmp.ne.s32.totalorder %s26, %s29
      %p35 = scmp.eq.s32.totalorder %s16, 0
      %p36 = por %p34, %p35
      %p37 = scmp.ne.s32.totalorder %s26, %s29
      %p38 = scmp.eq.s32.totalorder %s21, 1
      %p39 = por %p37, %p38
      %p40 = scmp.ne.s32.totalorder %s29, %s30
      %p41 = scmp.eq.s32.totalorder %s21, 0
      %p42 = por %p40, %p41
      %p43 = scmp.ne.s32.totalorder %s29, %s30
      %p44 = scmp.eq.s32.totalorder %s22, 1
      %p45 = por %p43, %p44
      %p47 = scmp.ne.s32.totalorder %s30, %s46
      %p48 = scmp.eq.s32.totalorder %s22, 0
      %p49 = por %p47, %p48
      %s51 = sadd.s32 %s50, 1
      %p54 = scmp.eq.s32.totalorder %s16, 1
      %p55 = scmp.ne.s32.totalorder %s50, %s52
      %p56 = scmp.eq.s32.totalorder %s16, 0
      %p57 = por %p55, %p56
      %p58 = scmp.ne.s32.totalorder %s50, %s52
      %p59 = scmp.eq.s32.totalorder %s21, 1
      %p60 = por %p58, %p59
      %p61 = scmp.ne.s32.totalorder %s52, %s53
      %p62 = scmp.eq.s32.totalorder %s21, 0
      %p63 = por %p61, %p62
      %p64 = scmp.ne.s32.totalorder %s52, %s53
      %p65 = scmp.eq.s32.totalorder %s22, 1
      %p66 = por %p64, %p65
      %p68 = scmp.ne.s32.totalorder %s53, %s67
      %p69 = scmp.eq.s32.totalorder %s22, 0
      %p70 = por %p68, %p69
      %s72 = sadd.s32 %s71, 1
      %p75 = scmp.eq.s32.totalorder %s16, 1
      %p76 = scmp.ne.s32.totalorder %s71, %s73
      %p77 = scmp.eq.s32.totalorder %s16, 0
      %p78 = por %p76, %p77
      %p79 = scmp.ne.s32.totalorder %s71, %s73
      %p80 = scmp.eq.s32.totalorder %s21, 1
      %p81 = por %p79, %p80
      %p82 = scmp.ne.s32.totalorder %s73, %s74
      %p83 = scmp.eq.s32.totalorder %s21, 0
      %p84 = por %p82, %p83
      %p85 = scmp.ne.s32.totalorder %s73, %s74
      %p86 = scmp.eq.s32.totalorder %s22, 1
      %p87 = por %p85, %p86
      %p89 = scmp.ne.s32.totalorder %s74, %s88
      %p90 = scmp.eq.s32.totalorder %s22, 0
      %p91 = por %p89, %p90
      %s93 = sadd.s32 %s92, 1
      %p96 = scmp.eq.s32.totalorder %s16, 1
      %p97 = scmp.ne.s32.totalorder %s92, %s94
      %p98 = scmp.eq.s32.totalorder %s16, 0
      %p99 = por %p97, %p98
      %p100 = scmp.ne.s32.totalorder %s92, %s94
      %p101 = scmp.eq.s32.totalorder %s21, 1
      %p102 = por %p100, %p101
      %p103 = scmp.ne.s32.totalorder %s94, %s95
      %p104 = scmp.eq.s32.totalorder %s21, 0
      %p105 = por %p103, %p104
      %p106 = scmp.ne.s32.totalorder %s94, %s95
      %p107 = scmp.eq.s32.totalorder %s22, 1
      %p108 = por %p106, %p107
      %p110 = scmp.ne.s32.totalorder %s95, %s109
      %p111 = scmp.eq.s32.totalorder %s22, 0
      %p112 = por %p110, %p111
      %s113 = ssub.s32 %s16, %s23
      %p114 = scmp.eq.s32.totalorder %s113, 0
      %s116 = sadd.s32 %s115, 1
      %s117 = scalar_select %p114, %s115, %s116
      %p120 = pneg %p114
      %p121 = scmp.eq.s32.totalorder %s16, 1
      %p122 = por %p120, %p121
      %p123 = scmp.ne.s32.totalorder %s115, %s118
      %p124 = scmp.eq.s32.totalorder %s16, 0
      %p125 = por %p123, %p124
      %p126 = scmp.ne.s32.totalorder %s115, %s118
      %p127 = scmp.eq.s32.totalorder %s21, 1
      %p128 = por %p126, %p127
      %p129 = scmp.ne.s32.totalorder %s118, %s119
      %p130 = scmp.eq.s32.totalorder %s21, 0
      %p131 = por %p129, %p130
      %p132 = scmp.ne.s32.totalorder %s118, %s119
      %p133 = scmp.eq.s32.totalorder %s22, 1
      %p134 = por %p132, %p133
      %p136 = scmp.ne.s32.totalorder %s119, %s135
      %p137 = scmp.eq.s32.totalorder %s22, 0
      %p138 = por %p136, %p137
      %p139 = scmp.le.s32.totalorder 1, %s16
      %p140 = scmp.lt.s32.totalorder %s16, 3
      %p141 = pnand %p139, %p140
      %p142 = pneg %p141
      // Predicated region
      $region9: #{tpu_custom_call.1} parent=5 // pred_check
        _
      $region10: #{tpu_custom_call.1} parent=5 // pred_check_branch
        %144 = sbr.rel (%p141) target = $region12
      $region11: #{tpu_custom_call.1} parent=5 // pred_region
        %s145 = ssub.s32 %s16, 1
        // Predicated region
        $region13: #{tpu_custom_call.1} parent=11 // pred_check
          %p146 = pneg %p63
        $region14: #{tpu_custom_call.1} parent=11 // pred_check_branch
          %148 = sbr.rel (%p146) target = $region16
        $region15: #{tpu_custom_call.1} parent=11 // pred_region
          _
        $region16: #{tpu_custom_call.1} parent=11 // pred_fallthru
          _
        // Predicated region
        $region17: #{tpu_custom_call.1} parent=11 // pred_check
          %p149 = pneg %p84
        $region18: #{tpu_custom_call.1} parent=11 // pred_check_branch
          %151 = sbr.rel (%p149) target = $region20
        $region19: #{tpu_custom_call.1} parent=11 // pred_region
          _
        $region20: #{tpu_custom_call.1} parent=11 // pred_fallthru
          _
        // Predicated region
        $region21: #{tpu_custom_call.1} parent=11 // pred_check
          %p152 = pneg %p105
        $region22: #{tpu_custom_call.1} parent=11 // pred_check_branch
          %154 = sbr.rel (%p152) target = $region24
        $region23: #{tpu_custom_call.1} parent=11 // pred_region
          _
        $region24: #{tpu_custom_call.1} parent=11 // pred_fallthru
          _
      $region12: #{tpu_custom_call.1} parent=5 // pred_fallthru
        _
      %p155 = scmp.lt.s32.totalorder %s16, 2
      // Predicated region
      $region25: #{tpu_custom_call.1} parent=5 // pred_check
        %p156 = pneg %p155
      $region26: #{tpu_custom_call.1} parent=5 // pred_check_branch
        %158 = sbr.rel (%p156) target = $region28
      $region27: #{tpu_custom_call.1} parent=5 // pred_region
        // Predicated region
        $region29: #{tpu_custom_call.1} parent=27 // pred_check
          %p159 = pneg %p36
        $region30: #{tpu_custom_call.1} parent=27 // pred_check_branch
          %161 = sbr.rel (%p159) target = $region32
        $region31: #{tpu_custom_call.1} parent=27 // pred_region
          %s162 = sand.u32 %s26, 1
          %s163 = scalar_lea.sflag [#allocation4], %s162
          %s164 = sand.u32 %s26, 1
          %s165 = smul.addr %s164, 16
          %s166 = scalar_lea.vmem [#allocation3], %s165
          %s168 = ssub.s32 256, 256
          %169 = vsyncadd %s163, %s168
          %s170 = smul.addr %s16, 2
          %s171 = smul.addr %s170, 128
          %s172 = scalar_lea.hbm %s0, %s171
          %s174 = sshll.u32 %s166, 4
          %s175 = int_to_ptr.vmem [resolvable:$true] %s174
          %177 = dma.hbm_to_vmem [thread:$0]  %s172, 256, %s175, %s163
        $region32: #{tpu_custom_call.1} parent=27 // pred_fallthru
          _
      $region28: #{tpu_custom_call.1} parent=5 // pred_fallthru
        _
      %p178 = scmp.le.s32.totalorder 1, %s16
      %p179 = scmp.lt.s32.totalorder %s16, 3
      %p180 = pnand %p178, %p179
      %p181 = pneg %p180
      // Predicated region
      $region33: #{tpu_custom_call.1} parent=5 // pred_check
        _
      $region34: #{tpu_custom_call.1} parent=5 // pred_check_branch
        %183 = sbr.rel (%p180) target = $region36
      $region35: #{tpu_custom_call.1} parent=5 // pred_region
        %s184 = ssub.s32 %s16, 1
        %s185 = sand.u32 %s29, 1
        %s186 = scalar_lea.sflag [#allocation4], %s185
        %s187 = sand.u32 %s29, 1
        %s188 = smul.addr %s187, 16
        %s189 = scalar_lea.vmem [#allocation3], %s188
        // Predicated region
        $region37: #{tpu_custom_call.1} parent=35 // pred_check
          %p190 = pneg %p42
        $region38: #{tpu_custom_call.1} parent=35 // pred_check_branch
          %192 = sbr.rel (%p190) target = $region40
        $region39: #{tpu_custom_call.1} parent=35 // pred_region
          %193 = dma.done %s186, 256
        $region40: #{tpu_custom_call.1} parent=35 // pred_fallthru
          _
        %s194 = sand.u32 %s29, 1
        %s195 = scalar_lea.sflag [#allocation4], %s194
        %s196 = sand.u32 %s29, 1
        %s197 = smul.addr %s196, 16
        %s198 = scalar_lea.vmem [#allocation3], %s197
        %p199 = pneg %p42
        %p200 = pneg %p39
        %p201 = pneg %p63
        %p202 = pneg %p60
        %p203 = pneg %p84
        %p204 = pneg %p81
        %p205 = pneg %p105
        %p206 = pneg %p102
        %p207 = pneg %p131
        %p208 = pneg %p128
        %s209 = sand.u32 %s118, 1
        %s210 = scalar_lea.sflag [#allocation5], %s209
        %s211 = sand.u32 %s118, 1
        %s212 = smul.addr %s211, 16
        %s213 = scalar_lea.vmem [#allocation6], %s212
        %v214 = vld [vmem:[%s189] sm:$0xff]
        %v215 = vld [vmem:[%s189 + $0x8] sm:$0xff]
        %v216 = vld [vmem:[%s2] ss:$4 sm:$0x3]
        %v218 = vlaneseq
        %v219 = vshrl.u32 %v218, 7
        %v220 = vsub.s32 0, %v219
        %v221 = vrot.slane %v216, %v220
        %v222 = vlaneseq
        %v223 = vshrl.u32 %v222, 7
        %v224 = vsub.s32 1, %v223
        %v225 = vrot.slane %v216, %v224
        %226 = vrot.lane.b32.xlu0 %v221, 111
        %v227 = vpop.permute.xlu0 %226
        %228 = vrot.lane.b32.xlu0 %v225, 111
        %v229 = vpop.permute.xlu0 %228
        %vm230 = vcmask 908288
        %v231 = vsel %vm230, %v227, %v229
        %v234 = vmul.f32 %v214, %v231
        %v235 = vmul.f32 %v215, %v229
        %238 = vrot.lane.b32.xlu0 %v234, 17
        %v239 = vpop.permute.xlu0 %238
        %240 = vrot.lane.b32.xlu0 %v235, 17
        %v241 = vpop.permute.xlu0 %240
        %vm242 = vcmask 138240
        %v243 = vsel %vm242, %v239, %v241
        %vm246 = vcmask 1047688
        %247 = vst.msk [vmem:[#allocation2] sm:$0xff] %vm246, %v239
        %248 = vst [vmem:[#allocation2 + $0x8] sm:$0xff] %v243
        %249 = vst.msk [vmem:[#allocation2] sm:$0xff] %vm242, 0.0
        %252 = vrot.lane.b32.xlu0 %v214, 16
        %v253 = vpop.permute.xlu0 %252
        %254 = vrot.lane.b32.xlu0 %v215, 16
        %v255 = vpop.permute.xlu0 %254
        %vm256 = vcmask 130048
        %v257 = vsel %vm256, %v253, %v255
        %vm260 = vcmask 1047680
        %261 = vst.msk [vmem:[#allocation2 + $0x10] sm:$0xff] %vm260, %v253
        %262 = vst [vmem:[#allocation2 + $0x18] sm:$0xff] %v257
        %263 = vst.msk [vmem:[#allocation2 + $0x10] sm:$0xff] %vm256, 0.0
        %s264 = scalar_lea.vmem %s2, 2
        %v265 = vld [vmem:[%s264] ss:$4 sm:$0x3]
        %v267 = vlaneseq
        %v268 = vshrl.u32 %v267, 7
        %v269 = vsub.s32 0, %v268
        %v270 = vrot.slane %v265, %v269
        %v271 = vlaneseq
        %v272 = vshrl.u32 %v271, 7
        %v273 = vsub.s32 1, %v272
        %v274 = vrot.slane %v265, %v273
        %275 = vrot.lane.b32.xlu0 %v270, 113
        %v276 = vpop.permute.xlu0 %275
        %277 = vrot.lane.b32.xlu0 %v274, 113
        %v278 = vpop.permute.xlu0 %277
        %vm279 = vcmask 924672
        %v280 = vsel %vm279, %v276, %v278
        %v283 = vmul.f32 %v214, %v280
        %v284 = vmul.f32 %v215, %v278
        %287 = vrot.lane.b32.xlu0 %v283, 15
        %v288 = vpop.permute.xlu0 %287
        %289 = vrot.lane.b32.xlu0 %v284, 15
        %v290 = vpop.permute.xlu0 %289
        %vm291 = vcmask 121856
        %v292 = vsel %vm291, %v288, %v290
        %vm295 = vcmask 1047672
        %296 = vst.msk [vmem:[#allocation2 + $0x20] sm:$0xff] %vm295, %v288
        %297 = vst [vmem:[#allocation2 + $0x28] sm:$0xff] %v292
        %298 = vst.msk [vmem:[#allocation2 + $0x20] sm:$0xff] %vm291, 0.0
        %v299 = vld [vmem:[%s2] ss:$4 sm:$0x3]
        %v301 = vlaneseq
        %v302 = vshrl.u32 %v301, 7
        %v303 = vsub.s32 0, %v302
        %v304 = vrot.slane %v299, %v303
        %v305 = vlaneseq
        %v306 = vshrl.u32 %v305, 7
        %v307 = vsub.s32 1, %v306
        %v308 = vrot.slane %v299, %v307
        %309 = vrot.lane.b32.xlu0 %v304, 127
        %v310 = vpop.permute.xlu0 %309
        %311 = vrot.lane.b32.xlu0 %v308, 127
        %v312 = vpop.permute.xlu0 %311
        %vm313 = vcmask 1039360
        %v314 = vsel %vm313, %v310, %v312
        %v317 = vmul.f32 %v214, %v314
        %v318 = vmul.f32 %v215, %v312
        %321 = vrot.lane.b32.xlu0 %v317, 1
        %v322 = vpop.permute.xlu0 %321
        %323 = vrot.lane.b32.xlu0 %v318, 1
        %v324 = vpop.permute.xlu0 %323
        %vm325 = vcmask 7168
        %v326 = vsel %vm325, %v322, %v324
        %vm329 = vcmask 1047560
        %330 = vst.msk [vmem:[#allocation2 + $0x30] sm:$0xff] %vm329, %v322
        %331 = vst [vmem:[#allocation2 + $0x38] sm:$0xff] %v326
        %332 = vst.msk [vmem:[#allocation2 + $0x30] sm:$0xff] %vm325, 0.0
        %333 = vst [vmem:[#allocation2 + $0x40] sm:$0xff] %v214
        %334 = vst [vmem:[#allocation2 + $0x48] sm:$0xff] %v215
        %v335 = vld [vmem:[%s264] ss:$4 sm:$0x3]
        %v337 = vlaneseq
        %v338 = vshrl.u32 %v337, 7
        %v339 = vsub.s32 0, %v338
        %v340 = vrot.slane %v335, %v339
        %v341 = vlaneseq
        %v342 = vshrl.u32 %v341, 7
        %v343 = vsub.s32 1, %v342
        %v344 = vrot.slane %v335, %v343
        %345 = vrot.lane.b32.xlu0 %v340, 1
        %v346 = vpop.permute.xlu0 %345
        %347 = vrot.lane.b32.xlu0 %v344, 1
        %v348 = vpop.permute.xlu0 %347
        %v349 = vsel %vm325, %v346, %v348
        %v352 = vmul.f32 %v214, %v346
        %v353 = vmul.f32 %v215, %v349
        %356 = vrot.lane.b32.xlu0 %v352, 127
        %v357 = vpop.permute.xlu0 %356
        %358 = vrot.lane.b32.xlu0 %v353, 127
        %v359 = vpop.permute.xlu0 %358
        %v360 = vsel %vm313, %v357, %v359
        %363 = vst [vmem:[#allocation2 + $0x50] sm:$0xff] %v360
        %364 = vst.msk [vmem:[#allocation2 + $0x58] sm:$0xff] %vm313, %v359
        %vm365 = vcmask 1048568
        %366 = vst.msk [vmem:[#allocation2 + $0x58] sm:$0xff] %vm365, 0.0
        %v367 = vld [vmem:[%s2] ss:$4 sm:$0x3]
        %v369 = vlaneseq
        %v370 = vshrl.u32 %v369, 7
        %v371 = vsub.s32 0, %v370
        %v372 = vrot.slane %v367, %v371
        %v373 = vlaneseq
        %v374 = vshrl.u32 %v373, 7
        %v375 = vsub.s32 1, %v374
        %v376 = vrot.slane %v367, %v375
        %377 = vrot.lane.b32.xlu0 %v372, 15
        %v378 = vpop.permute.xlu0 %377
        %379 = vrot.lane.b32.xlu0 %v376, 15
        %v380 = vpop.permute.xlu0 %379
        %v381 = vsel %vm291, %v378, %v380
        %v384 = vmul.f32 %v214, %v378
        %v385 = vmul.f32 %v215, %v381
        %388 = vrot.lane.b32.xlu0 %v384, 113
        %v389 = vpop.permute.xlu0 %388
        %390 = vrot.lane.b32.xlu0 %v385, 113
        %v391 = vpop.permute.xlu0 %390
        %v392 = vsel %vm279, %v389, %v391
        %395 = vst [vmem:[#allocation2 + $0x60] sm:$0xff] %v392
        %396 = vst.msk [vmem:[#allocation2 + $0x68] sm:$0xff] %vm279, %v391
        %vm397 = vcmask 1048456
        %398 = vst.msk [vmem:[#allocation2 + $0x68] sm:$0xff] %vm397, 0.0
        %399 = vrot.lane.b32.xlu0 %v214, 112
        %v400 = vpop.permute.xlu0 %399
        %401 = vrot.lane.b32.xlu0 %v215, 112
        %v402 = vpop.permute.xlu0 %401
        %vm403 = vcmask 916480
        %v404 = vsel %vm403, %v400, %v402
        %407 = vst [vmem:[#allocation2 + $0x70] sm:$0xff] %v404
        %408 = vst.msk [vmem:[#allocation2 + $0x78] sm:$0xff] %vm403, %v402
        %vm409 = vcmask 1048448
        %410 = vst.msk [vmem:[#allocation2 + $0x78] sm:$0xff] %vm409, 0.0
        %v411 = vld [vmem:[%s264] ss:$4 sm:$0x3]
        %v413 = vlaneseq
        %v414 = vshrl.u32 %v413, 7
        %v415 = vsub.s32 0, %v414
        %v416 = vrot.slane %v411, %v415
        %v417 = vlaneseq
        %v418 = vshrl.u32 %v417, 7
        %v419 = vsub.s32 1, %v418
        %v420 = vrot.slane %v411, %v419
        %421 = vrot.lane.b32.xlu0 %v416, 17
        %v422 = vpop.permute.xlu0 %421
        %423 = vrot.lane.b32.xlu0 %v420, 17
        %v424 = vpop.permute.xlu0 %423
        %v425 = vsel %vm242, %v422, %v424
        %v428 = vmul.f32 %v214, %v422
        %v429 = vmul.f32 %v215, %v425
        %432 = vrot.lane.b32.xlu0 %v428, 111
        %v433 = vpop.permute.xlu0 %432
        %434 = vrot.lane.b32.xlu0 %v429, 111
        %v435 = vpop.permute.xlu0 %434
        %v436 = vsel %vm230, %v433, %v435
        %439 = vst [vmem:[#allocation2 + $0x80] sm:$0xff] %v436
        %440 = vst.msk [vmem:[#allocation2 + $0x88] sm:$0xff] %vm230, %v435
        %vm441 = vcmask 1048440
        %442 = vst.msk [vmem:[#allocation2 + $0x88] sm:$0xff] %vm441, 0.0
        %v443 = vld [vmem:[%s1] sm:$0xff]
        %v444 = vld [vmem:[#allocation2] sm:$0xff]
        %v445 = vld [vmem:[#allocation2 + $0x8] sm:$0xff]
        %v446 = vld [vmem:[#allocation2 + $0x10] sm:$0xff]
        %v447 = vld [vmem:[#allocation2 + $0x18] sm:$0xff]
        %v448 = vld [vmem:[#allocation2 + $0x20] sm:$0xff]
        %v449 = vld [vmem:[#allocation2 + $0x28] sm:$0xff]
        %v450 = vld [vmem:[#allocation2 + $0x30] sm:$0xff]
        %v451 = vld [vmem:[#allocation2 + $0x38] sm:$0xff]
        %v452 = vld [vmem:[#allocation2 + $0x40] sm:$0xff]
        %v453 = vld [vmem:[#allocation2 + $0x48] sm:$0xff]
        %v454 = vld [vmem:[#allocation2 + $0x50] sm:$0xff]
        %v455 = vld [vmem:[#allocation2 + $0x58] sm:$0xff]
        %v456 = vld [vmem:[#allocation2 + $0x60] sm:$0xff]
        %v457 = vld [vmem:[#allocation2 + $0x68] sm:$0xff]
        %v458 = vld [vmem:[#allocation2 + $0x70] sm:$0xff]
        %v459 = vld [vmem:[#allocation2 + $0x78] sm:$0xff]
        %v460 = vld [vmem:[#allocation2 + $0x80] sm:$0xff]
        %v461 = vld [vmem:[#allocation2 + $0x88] sm:$0xff]
        %v462 = vld [vmem:[%s3] sm:$0xff]
        %464 = vset.pattern.permute.xlu0 0
        %465 = vperm.xlu0 %464, %v462
        %v466 = vpop.permute.xlu0 %465
        %vm468 = vcmask 588800
        %v470 = vsel %vm468, %v443, 0
        %472 = vmatprep.subr.mxu0 %v445
        %473 = vmatpush1.msra.mxu0 %v444
        %474 = vmatprep.subr.mxu0 %v447
        %475 = vmatpush1.msra.mxu0 %v446
        %476 = vmatprep.subr.mxu0 %v449
        %477 = vmatpush1.msra.mxu0 %v448
        %478 = vmatprep.subr.mxu0 %v451
        %479 = vmatpush1.msra.mxu0 %v450
        %480 = vmatprep.subr.mxu0 %v453
        %481 = vmatpush1.msra.mxu0 %v452
        %482 = vmatprep.subr.mxu0 %v455
        %483 = vmatpush1.msra.mxu0 %v454
        %484 = vmatprep.subr.mxu0 %v457
        %485 = vmatpush1.msra.mxu0 %v456
        %486 = vmatprep.subr.mxu0 %v459
        %487 = vmatpush1.msra.mxu0 %v458
        %488 = vmatprep.subr.mxu0 %v461
        %489 = vmatpush1.msra.mxu0 %v460
        %490 = vmatprep.subr.mxu0 0.0
        %491 = vmatpush1.msra.mxu0 0.0
        %492 = vmatprep.subr.mxu0 0.0
        %493 = vmatpush1.msra.mxu0 0.0
        %494 = vmatprep.subr.mxu0 0.0
        %495 = vmatpush1.msra.mxu0 0.0
        %496 = vmatprep.subr.mxu0 0.0
        %497 = vmatpush1.msra.mxu0 0.0
        %498 = vmatprep.subr.mxu0 0.0
        %499 = vmatpush1.msra.mxu0 0.0
        %500 = vmatprep.subr.mxu0 0.0
        %501 = vmatpush1.msra.mxu0 0.0
        %502 = vmatprep.subr.mxu0 0.0
        %503 = vmatpush1.msra.mxu0 0.0
        %504 = vmatprep.subr.mxu0 0.0
        %505 = vmatpush1.msra.mxu0 0.0
        %506 = vmatprep.subr.mxu0 0.0
        %507 = vmatpush1.msra.mxu0 0.0
        %508 = vmatprep.subr.mxu0 0.0
        %509 = vmatpush1.msra.mxu0 0.0
        %510 = vmatprep.subr.mxu0 0.0
        %511 = vmatpush1.msra.mxu0 0.0
        %512 = vmatprep.subr.mxu0 0.0
        %513 = vmatpush1.msra.mxu0 0.0
        %514 = vmatprep.subr.mxu0 0.0
        %515 = vmatpush1.msra.mxu0 0.0
        %516 = vmatprep.subr.mxu0 0.0
        %517 = vmatpush1.msra.mxu0 0.0
        %518 = vmatprep.subr.mxu0 0.0
        %519 = vmatpush1.msra.mxu0 0.0
        %520 = vmatprep.subr.mxu0 0.0
        %521 = vmatpush1.msra.mxu0 0.0
        %522 = vmatprep.subr.mxu0 0.0
        %523 = vmatpush1.msra.mxu0 0.0
        %524 = vmatprep.subr.mxu0 0.0
        %525 = vmatpush1.msra.mxu0 0.0
        %526 = vmatprep.subr.mxu0 0.0
        %527 = vmatpush1.msra.mxu0 0.0
        %528 = vmatprep.subr.mxu0 0.0
        %529 = vmatpush1.msra.mxu0 0.0
        %530 = vmatprep.subr.mxu0 0.0
        %531 = vmatpush1.msra.mxu0 0.0
        %532 = vmatprep.subr.mxu0 0.0
        %533 = vmatpush1.msra.mxu0 0.0
        %534 = vmatprep.subr.mxu0 0.0
        %535 = vmatpush1.msra.mxu0 0.0
        %536 = vmatprep.mubr.f32.mxu0 0.0
        %537 = vmatmul.mubr.f32.gmra.mrb[0].mxu0 %v470
        %v538 = vpop.f32.mrb[0].mxu0
        %v539 = vadd.f32 %v466, %v538
        %v540 = vpop.f32.mrb[0].mxu0
        %v541 = vadd.f32 %v466, %v540
        %542 = vdwg.mxu0
        %543 = vst [vmem:[%s213] sm:$0xff] %v539
        %544 = vst [vmem:[%s213 + $0x8] sm:$0xff] %v541
        %s545 = sand.u32 %s118, 1
        %s546 = scalar_lea.sflag [#allocation5], %s545
        %s547 = sand.u32 %s118, 1
        %s548 = smul.addr %s547, 16
        %s549 = scalar_lea.vmem [#allocation6], %s548
        // Predicated region
        $region41: #{tpu_custom_call.1} parent=35 // pred_check
          %p550 = pneg %p128
        $region42: #{tpu_custom_call.1} parent=35 // pred_check_branch
          %552 = sbr.rel (%p550) target = $region44
        $region43: #{tpu_custom_call.1} parent=35 // pred_region
          %s554 = ssub.s32 256, 256
          %555 = vsyncadd %s546, %s554
          %s556 = smul.addr %s21, 2
          %s557 = smul.addr %s556, 128
          %s558 = scalar_lea.hbm %s4, %s557
          %s560 = sshll.u32 %s549, 4
          %s561 = int_to_ptr.vmem [resolvable:$true] %s560
          %563 = dma.vmem_to_hbm [thread:$0]  %s561, 256, %s558, %s546
        $region44: #{tpu_custom_call.1} parent=35 // pred_fallthru
          _
      $region36: #{tpu_custom_call.1} parent=5 // pred_fallthru
        _
      %p564 = scmp.le.s32.totalorder 2, %s16
      // Predicated region
      $region45: #{tpu_custom_call.1} parent=5 // pred_check
        %p565 = pneg %p564
      $region46: #{tpu_custom_call.1} parent=5 // pred_check_branch
        %567 = sbr.rel (%p565) target = $region48
      $region47: #{tpu_custom_call.1} parent=5 // pred_region
        %s568 = ssub.s32 %s16, 2
        // Predicated region
        $region49: #{tpu_custom_call.1} parent=47 // pred_check
          %p569 = pneg %p134
        $region50: #{tpu_custom_call.1} parent=47 // pred_check_branch
          %571 = sbr.rel (%p569) target = $region52
        $region51: #{tpu_custom_call.1} parent=47 // pred_region
          %s572 = sand.u32 %s119, 1
          %s573 = scalar_lea.sflag [#allocation5], %s572
          %s574 = sand.u32 %s119, 1
          %s575 = smul.addr %s574, 16
          %s576 = scalar_lea.vmem [#allocation6], %s575
          %577 = dma.done %s573, 256
        $region52: #{tpu_custom_call.1} parent=47 // pred_fallthru
          _
      $region48: #{tpu_custom_call.1} parent=5 // pred_fallthru
        _
    $region6: #{tpu_custom_call.1} parent=1 // loop_footer
      %s20 = sadd.s32 1, %s16
    $region7: #{tpu_custom_call.1} parent=1 // loop_footer_branch
      %15 = sbr.rel target = $region3
    $region8: #{tpu_custom_call.1} parent=1 // loop_exit
      _
    %578 = vsyncpa [#allocation4], 1
    %s579 = scalar_lea.sflag [#allocation4], 1
    %580 = vsyncpa %s579, 1
    %581 = vsyncpa [#allocation5], 1
    %s582 = scalar_lea.sflag [#allocation5], 1
    %583 = vsyncpa %s582, 1

</llo_original>
